<compile_context>
chip_gen: v7x
topology: tpu7x:2x2x1
jax: 0.10.0
libtpu: 0.0.40
codegen_flags: <defaults>
</compile_context>

<pallas_src>
import jax
import jax.numpy as jnp
from jax.experimental import pallas as pl
from jax.experimental.pallas import tpu as pltpu


def _ws_encoder_kernel(x_ref, ww_ref, wep_ref, bep_ref, o_ref):
    # x_ref:  (BB, T*D) in the stored (bf16) dtype, lane-dense.
    # ww_ref: (1, D) f32.  wep_ref: (D, proj) bf16.  bep_ref: (1, proj) f32.
    D = ww_ref.shape[-1]
    T = x_ref.shape[-1] // D
    ww = ww_ref[...]                                                    # (1, D) f32

    # --- weight_proj scores, one 128-lane-aligned chunk at a time (VPU mul + XLU reduce).
    # weight_proj bias omitted: softmax over chunks is shift-invariant, so adding the
    # same scalar to every chunk's score cannot change the weights.
    cols = []
    for t in range(T):
        xt = x_ref[:, t * D:(t + 1) * D]                                # (BB, D) bf16
        cols.append(jnp.sum(xt * ww, axis=-1, keepdims=True))          # (BB, 1) f32
    scores = jnp.concatenate(cols, axis=-1)                             # (BB, T) f32

    # --- softmax over the chunk axis (lane axis), numerically stabilized.
    m = jnp.max(scores, axis=-1, keepdims=True)                         # (BB, 1)
    e = jnp.exp(scores - m)                                             # (BB, T)
    w = e * pl.reciprocal(jnp.sum(e, axis=-1, keepdims=True), approx=False)

    # --- weighted-sum pooling; x stays in its stored dtype, accumulation in f32.
    pooled = w[:, 0:1] * x_ref[:, 0:D]                                  # (BB, D) f32
    for t in range(1, T):
        pooled = pooled + w[:, t:t + 1] * x_ref[:, t * D:(t + 1) * D]

    # --- fused embedding_proj + projection (folded in wrapper), bias, ReLU (MXU, bf16 in / f32 acc).
    out = jnp.dot(pooled.astype(jnp.bfloat16), wep_ref[...],
                  preferred_element_type=jnp.float32) + bep_ref[...]
    o_ref[...] = jnp.maximum(out, 0.0).astype(o_ref.dtype)


def _round_up(n, m):
    return ((n + m - 1) // m) * m


def ds_encoder_weighted_sum(x, params, *, max_block_b=1024,
                            compute_dtype=jnp.bfloat16):
    """x: [B, T, 768] (any float dtype). Returns [B, projection_dim] float32."""
    B, T, D = x.shape
    w_w = params["w_w"]          # [D, 1]
    # params["b_w"] intentionally unused: softmax over chunks is shift-invariant.
    w_e, b_e = params["w_e"], params["b_e"]        # [D, hidden], [1, hidden]
    w_p, b_p = params["w_p"], params["b_p"]        # [hidden, proj], [1, proj]
    proj = w_p.shape[1]

    hp = jax.lax.Precision.HIGHEST
    # Fold the two back-to-back affine layers (no nonlinearity between them in the module).
    w_ep = jnp.dot(w_e, w_p, precision=hp).astype(jnp.bfloat16)            # [D, proj]
    b_ep = (jnp.dot(b_e, w_p, precision=hp) + b_p).astype(jnp.float32)     # [1, proj]
    ww_row = w_w.reshape(1, D).astype(jnp.float32)

    # Lane-dense 2-D slab in the compute dtype (halves HBM traffic when bf16).
    x2 = x.astype(compute_dtype).reshape(B, T * D)
    itemsize = jnp.dtype(compute_dtype).itemsize

    # --- VMEM-derived block-batch size (v7x has 64 MiB/TC, v5e/v6e have 128 MiB).
    try:
        vmem_cap = int(pltpu.get_tpu_info().vmem_capacity_bytes)
    except Exception:  # pragma: no cover - conservative fallback
        vmem_cap = 64 * 1024 * 1024
    vmem_limit = min(vmem_cap - 8 * 1024 * 1024, 96 * 1024 * 1024)
    budget = int(vmem_limit * 0.8) - 2 * 1024 * 1024          # headroom: weights + misc
    # Double-buffered input slab + f32 working set (pooled, per-chunk product, scores, out).
    bytes_per_row = 2 * T * D * itemsize + (2 * D + T + 2 * proj) * 4
    bb_fit = max(8, budget // bytes_per_row)
    BB = max(8, (min(int(max_block_b), int(bb_fit)) // 8) * 8)
    if B <= 8:
        BB = B                                   # single block; block dims == full array dims
    else:
        # Guarantee >= 2 grid steps so both v7x TensorCores get work.
        BB = min(BB, _round_up(pl.cdiv(B, 2), 8))
    B_pad = _round_up(B, BB)
    if B_pad != B:
        x2 = jnp.pad(x2, ((0, B_pad - B), (0, 0)))   # padded rows sliced off below

    cost = pl.CostEstimate(
        flops=int(B_pad * (4 * T * D + 2 * D * proj + 8 * T)),
        transcendentals=int(B_pad * (T + 1)),
        bytes_accessed=int(B_pad * T * D * itemsize + B_pad * proj * 4
                           + D * proj * 2 + (D + proj) * 4),
    )

    out = pl.pallas_call(
        _ws_encoder_kernel,
        out_shape=jax.ShapeDtypeStruct((B_pad, proj), jnp.float32),
        grid_spec=pltpu.PrefetchScalarGridSpec(
            num_scalar_prefetch=0,
            grid=(B_pad // BB,),
            in_specs=[
                pl.BlockSpec((BB, T * D), lambda b: (b, 0)),    # x slab per step
                pl.BlockSpec((1, D), lambda b: (0, 0)),         # w_w row (f32)
                pl.BlockSpec((D, proj), lambda b: (0, 0)),      # folded W_ep (bf16)
                pl.BlockSpec((1, proj), lambda b: (0, 0)),      # folded b_ep (f32)
            ],
            out_specs=pl.BlockSpec((BB, proj), lambda b: (b, 0)),
        ),
        compiler_params=pltpu.CompilerParams(
            dimension_semantics=("parallel",),
            vmem_limit_bytes=int(vmem_limit),
        ),
        cost_estimate=cost,
    )(x2, ww_row, w_ep, b_ep)
    return out[:B]


def _init_params(key, in_dim, hidden_dim, projection_dim):
    """Deterministic PyTorch-Linear-style init (uniform +/- 1/sqrt(fan_in))."""
    ks = jax.random.split(key, 6)

    def lin(kw, kb, fan_in, fan_out):
        bound = 1.0 / jnp.sqrt(fan_in)
        w = jax.random.uniform(kw, (fan_in, fan_out), jnp.float32, -bound, bound)
        b = jax.random.uniform(kb, (1, fan_out), jnp.float32, -bound, bound)
        return w, b

    w_w, b_w = lin(ks[0], ks[1], in_dim, 1)
    w_e, b_e = lin(ks[2], ks[3], in_dim, hidden_dim)
    w_p, b_p = lin(ks[4], ks[5], hidden_dim, projection_dim)
    return {"w_w": w_w, "b_w": b_w, "w_e": w_e, "b_e": b_e, "w_p": w_p, "b_p": b_p}


def _reference(x, p):
    # Pure-JAX, f32, unfolded forward of the PyTorch module (for verification).
    scores = jnp.sum(x * p["w_w"].reshape(1, 1, -1), axis=-1, keepdims=True) + p["b_w"][0, 0]
    weights = jax.nn.softmax(scores, axis=1)                              # softmax over T
    pooled = jnp.sum(weights * x, axis=1)                                 # [B, 768]
    hp = jax.lax.Precision.HIGHEST
    h = jnp.dot(pooled, p["w_e"], precision=hp) + p["b_e"]                # [B, hidden]
    out = jnp.dot(h, p["w_p"], precision=hp) + p["b_p"]                   # [B, proj]
    return jnp.maximum(out, 0.0)


if __name__ == "__main__":
    D, HIDDEN, PROJ = 768, 32, 16      # embeddings are 768-d (BERT), per the module
    T = 8                              # number of chunks

    key = jax.random.PRNGKey(0)
    kx1, kx2, kx3, kp = jax.random.split(key, 4)
    params = _init_params(kp, D, HIDDEN, PROJ)

    def check(x, out, label):
        # The wrapper feeds bf16 embeddings to the kernel; compare against the f32
        # reference evaluated on the same bf16-rounded input.
        ref = _reference(x.astype(jnp.bfloat16).astype(jnp.float32), params)
        assert out.shape == ref.shape, f"shape mismatch ({label})"
        assert jnp.allclose(out, ref, atol=1e-2, rtol=1e-2), f"mismatch vs reference ({label})"

    # Case 1: tiny batch -> single block whose dims equal the full array dims.
    x1 = jax.random.normal(kx1, (2, T, D), jnp.float32)
    out1 = jax.block_until_ready(ds_encoder_weighted_sum(x1, params))
    check(x1, out1, "case 1")

    # Case 2: batch not divisible by the block size -> padding + 3-step grid.
    x2 = jax.random.normal(kx2, (20, T, D), jnp.float32)
    out2 = jax.block_until_ready(ds_encoder_weighted_sum(x2, params, max_block_b=8))
    check(x2, out2, "case 2")

    # Case 3: default block size, medium batch -> >= 2 parallel grid steps (megacore split).
    x3 = jax.random.normal(kx3, (40, T, D), jnp.float32)
    out3 = jax.block_until_ready(ds_encoder_weighted_sum(x3, params))
    check(x3, out3, "case 3")

    print("KERNEL_OK")
</pallas_src>

<mosaic_0001>
module attributes {stable_mosaic.version = 11 : i64} {
  func.func @_ws_encoder_kernel(%arg0: i32, %arg1: memref<2x6144xbf16, #tpu.memory_space<vmem>>, %arg2: memref<1x768xf32, #tpu.memory_space<vmem>>, %arg3: memref<768x16xbf16, #tpu.memory_space<vmem>>, %arg4: memref<1x16xf32, #tpu.memory_space<vmem>>, %arg5: memref<2x16xf32, #tpu.memory_space<vmem>>) attributes {dimension_semantics = [#tpu.dimension_semantics<parallel>], iteration_bounds = array<i64: 1>, scalar_prefetch = 0 : i64, scratch_operands = 0 : i64, tpu.core_type = #tpu.core_type<tc>, window_params = [{transform_indices = @transform_0, window_bounds = array<i64: 2, 6144>}, {pipeline_mode = #tpu.pipeline_mode<synchronous>, transform_indices = @transform_1, window_bounds = array<i64: 1, 768>}, {pipeline_mode = #tpu.pipeline_mode<synchronous>, transform_indices = @transform_2, window_bounds = array<i64: 768, 16>}, {pipeline_mode = #tpu.pipeline_mode<synchronous>, transform_indices = @transform_3, window_bounds = array<i64: 1, 16>}, {transform_indices = @transform_4, window_bounds = array<i64: 2, 16>}]} {
    %c0 = arith.constant 0 : index
    %c0_0 = arith.constant 0 : index
    %0 = vector.load %arg2[%c0, %c0_0] : memref<1x768xf32, #tpu.memory_space<vmem>>, vector<1x768xf32>
    %c0_1 = arith.constant 0 : index
    %c0_2 = arith.constant 0 : index
    %1 = vector.load %arg1[%c0_1, %c0_2] : memref<2x6144xbf16, #tpu.memory_space<vmem>>, vector<2x768xbf16>
    %2 = arith.extf %1 : vector<2x768xbf16> to vector<2x768xf32>
    %3 = vector.broadcast %0 : vector<1x768xf32> to vector<2x768xf32>
    %4 = arith.mulf %2, %3 : vector<2x768xf32>
    %cst = arith.constant dense<0.000000e+00> : vector<2xf32>
    %5 = vector.multi_reduction <add>, %4, %cst [1] : vector<2x768xf32> to vector<2xf32>
    %6 = vector.shape_cast %5 : vector<2xf32> to vector<2x1xf32>
    %c0_3 = arith.constant 0 : index
    %c768 = arith.constant 768 : index
    %7 = vector.load %arg1[%c0_3, %c768] : memref<2x6144xbf16, #tpu.memory_space<vmem>>, vector<2x768xbf16>
    %8 = arith.extf %7 : vector<2x768xbf16> to vector<2x768xf32>
    %9 = vector.broadcast %0 : vector<1x768xf32> to vector<2x768xf32>
    %10 = arith.mulf %8, %9 : vector<2x768xf32>
    %cst_4 = arith.constant dense<0.000000e+00> : vector<2xf32>
    %11 = vector.multi_reduction <add>, %10, %cst_4 [1] : vector<2x768xf32> to vector<2xf32>
    %12 = vector.shape_cast %11 : vector<2xf32> to vector<2x1xf32>
    %c0_5 = arith.constant 0 : index
    %c1536 = arith.constant 1536 : index
    %13 = vector.load %arg1[%c0_5, %c1536] : memref<2x6144xbf16, #tpu.memory_space<vmem>>, vector<2x768xbf16>
    %14 = arith.extf %13 : vector<2x768xbf16> to vector<2x768xf32>
    %15 = vector.broadcast %0 : vector<1x768xf32> to vector<2x768xf32>
    %16 = arith.mulf %14, %15 : vector<2x768xf32>
    %cst_6 = arith.constant dense<0.000000e+00> : vector<2xf32>
    %17 = vector.multi_reduction <add>, %16, %cst_6 [1] : vector<2x768xf32> to vector<2xf32>
    %18 = vector.shape_cast %17 : vector<2xf32> to vector<2x1xf32>
    %c0_7 = arith.constant 0 : index
    %c2304 = arith.constant 2304 : index
    %19 = vector.load %arg1[%c0_7, %c2304] : memref<2x6144xbf16, #tpu.memory_space<vmem>>, vector<2x768xbf16>
    %20 = arith.extf %19 : vector<2x768xbf16> to vector<2x768xf32>
    %21 = vector.broadcast %0 : vector<1x768xf32> to vector<2x768xf32>
    %22 = arith.mulf %20, %21 : vector<2x768xf32>
    %cst_8 = arith.constant dense<0.000000e+00> : vector<2xf32>
    %23 = vector.multi_reduction <add>, %22, %cst_8 [1] : vector<2x768xf32> to vector<2xf32>
    %24 = vector.shape_cast %23 : vector<2xf32> to vector<2x1xf32>
    %c0_9 = arith.constant 0 : index
    %c3072 = arith.constant 3072 : index
    %25 = vector.load %arg1[%c0_9, %c3072] : memref<2x6144xbf16, #tpu.memory_space<vmem>>, vector<2x768xbf16>
    %26 = arith.extf %25 : vector<2x768xbf16> to vector<2x768xf32>
    %27 = vector.broadcast %0 : vector<1x768xf32> to vector<2x768xf32>
    %28 = arith.mulf %26, %27 : vector<2x768xf32>
    %cst_10 = arith.constant dense<0.000000e+00> : vector<2xf32>
    %29 = vector.multi_reduction <add>, %28, %cst_10 [1] : vector<2x768xf32> to vector<2xf32>
    %30 = vector.shape_cast %29 : vector<2xf32> to vector<2x1xf32>
    %c0_11 = arith.constant 0 : index
    %c3840 = arith.constant 3840 : index
    %31 = vector.load %arg1[%c0_11, %c3840] : memref<2x6144xbf16, #tpu.memory_space<vmem>>, vector<2x768xbf16>
    %32 = arith.extf %31 : vector<2x768xbf16> to vector<2x768xf32>
    %33 = vector.broadcast %0 : vector<1x768xf32> to vector<2x768xf32>
    %34 = arith.mulf %32, %33 : vector<2x768xf32>
    %cst_12 = arith.constant dense<0.000000e+00> : vector<2xf32>
    %35 = vector.multi_reduction <add>, %34, %cst_12 [1] : vector<2x768xf32> to vector<2xf32>
    %36 = vector.shape_cast %35 : vector<2xf32> to vector<2x1xf32>
    %c0_13 = arith.constant 0 : index
    %c4608 = arith.constant 4608 : index
    %37 = vector.load %arg1[%c0_13, %c4608] : memref<2x6144xbf16, #tpu.memory_space<vmem>>, vector<2x768xbf16>
    %38 = arith.extf %37 : vector<2x768xbf16> to vector<2x768xf32>
    %39 = vector.broadcast %0 : vector<1x768xf32> to vector<2x768xf32>
    %40 = arith.mulf %38, %39 : vector<2x768xf32>
    %cst_14 = arith.constant dense<0.000000e+00> : vector<2xf32>
    %41 = vector.multi_reduction <add>, %40, %cst_14 [1] : vector<2x768xf32> to vector<2xf32>
    %42 = vector.shape_cast %41 : vector<2xf32> to vector<2x1xf32>
    %c0_15 = arith.constant 0 : index
    %c5376 = arith.constant 5376 : index
    %43 = vector.load %arg1[%c0_15, %c5376] : memref<2x6144xbf16, #tpu.memory_space<vmem>>, vector<2x768xbf16>
    %44 = arith.extf %43 : vector<2x768xbf16> to vector<2x768xf32>
    %45 = vector.broadcast %0 : vector<1x768xf32> to vector<2x768xf32>
    %46 = arith.mulf %44, %45 : vector<2x768xf32>
    %cst_16 = arith.constant dense<0.000000e+00> : vector<2xf32>
    %47 = vector.multi_reduction <add>, %46, %cst_16 [1] : vector<2x768xf32> to vector<2xf32>
    %48 = vector.shape_cast %47 : vector<2xf32> to vector<2x1xf32>
    %49 = tpu.concatenate %6, %12, %18, %24, %30, %36, %42, %48 in 1 : vector<2x1xf32>, vector<2x1xf32>, vector<2x1xf32>, vector<2x1xf32>, vector<2x1xf32>, vector<2x1xf32>, vector<2x1xf32>, vector<2x1xf32> -> vector<2x8xf32>
    %cst_17 = arith.constant dense<0xFF800000> : vector<2xf32>
    %50 = vector.multi_reduction <maximumf>, %49, %cst_17 [1] : vector<2x8xf32> to vector<2xf32>
    %51 = vector.shape_cast %50 : vector<2xf32> to vector<2x1xf32>
    %52 = vector.broadcast %51 : vector<2x1xf32> to vector<2x8xf32>
    %53 = arith.subf %49, %52 : vector<2x8xf32>
    %54 = math.exp %53 : vector<2x8xf32>
    %cst_18 = arith.constant dense<0.000000e+00> : vector<2xf32>
    %55 = vector.multi_reduction <add>, %54, %cst_18 [1] : vector<2x8xf32> to vector<2xf32>
    %56 = vector.shape_cast %55 : vector<2xf32> to vector<2x1xf32>
    %57 = tpu.reciprocal %56 : vector<2x1xf32> -> vector<2x1xf32>
    %58 = vector.broadcast %57 : vector<2x1xf32> to vector<2x8xf32>
    %59 = arith.mulf %54, %58 : vector<2x8xf32>
    %60 = vector.extract_strided_slice %59 {offsets = [0, 0], sizes = [2, 1], strides = [1, 1]} : vector<2x8xf32> to vector<2x1xf32>
    %c0_19 = arith.constant 0 : index
    %c0_20 = arith.constant 0 : index
    %61 = vector.load %arg1[%c0_19, %c0_20] : memref<2x6144xbf16, #tpu.memory_space<vmem>>, vector<2x768xbf16>
    %62 = arith.extf %61 : vector<2x768xbf16> to vector<2x768xf32>
    %63 = vector.broadcast %60 : vector<2x1xf32> to vector<2x768xf32>
    %64 = arith.mulf %63, %62 : vector<2x768xf32>
    %65 = vector.extract_strided_slice %59 {offsets = [0, 1], sizes = [2, 1], strides = [1, 1]} : vector<2x8xf32> to vector<2x1xf32>
    %c0_21 = arith.constant 0 : index
    %c768_22 = arith.constant 768 : index
    %66 = vector.load %arg1[%c0_21, %c768_22] : memref<2x6144xbf16, #tpu.memory_space<vmem>>, vector<2x768xbf16>
    %67 = arith.extf %66 : vector<2x768xbf16> to vector<2x768xf32>
    %68 = vector.broadcast %65 : vector<2x1xf32> to vector<2x768xf32>
    %69 = arith.mulf %68, %67 : vector<2x768xf32>
    %70 = arith.addf %64, %69 : vector<2x768xf32>
    %71 = vector.extract_strided_slice %59 {offsets = [0, 2], sizes = [2, 1], strides = [1, 1]} : vector<2x8xf32> to vector<2x1xf32>
    %c0_23 = arith.constant 0 : index
    %c1536_24 = arith.constant 1536 : index
    %72 = vector.load %arg1[%c0_23, %c1536_24] : memref<2x6144xbf16, #tpu.memory_space<vmem>>, vector<2x768xbf16>
    %73 = arith.extf %72 : vector<2x768xbf16> to vector<2x768xf32>
    %74 = vector.broadcast %71 : vector<2x1xf32> to vector<2x768xf32>
    %75 = arith.mulf %74, %73 : vector<2x768xf32>
    %76 = arith.addf %70, %75 : vector<2x768xf32>
    %77 = vector.extract_strided_slice %59 {offsets = [0, 3], sizes = [2, 1], strides = [1, 1]} : vector<2x8xf32> to vector<2x1xf32>
    %c0_25 = arith.constant 0 : index
    %c2304_26 = arith.constant 2304 : index
    %78 = vector.load %arg1[%c0_25, %c2304_26] : memref<2x6144xbf16, #tpu.memory_space<vmem>>, vector<2x768xbf16>
    %79 = arith.extf %78 : vector<2x768xbf16> to vector<2x768xf32>
    %80 = vector.broadcast %77 : vector<2x1xf32> to vector<2x768xf32>
    %81 = arith.mulf %80, %79 : vector<2x768xf32>
    %82 = arith.addf %76, %81 : vector<2x768xf32>
    %83 = vector.extract_strided_slice %59 {offsets = [0, 4], sizes = [2, 1], strides = [1, 1]} : vector<2x8xf32> to vector<2x1xf32>
    %c0_27 = arith.constant 0 : index
    %c3072_28 = arith.constant 3072 : index
    %84 = vector.load %arg1[%c0_27, %c3072_28] : memref<2x6144xbf16, #tpu.memory_space<vmem>>, vector<2x768xbf16>
    %85 = arith.extf %84 : vector<2x768xbf16> to vector<2x768xf32>
    %86 = vector.broadcast %83 : vector<2x1xf32> to vector<2x768xf32>
    %87 = arith.mulf %86, %85 : vector<2x768xf32>
    %88 = arith.addf %82, %87 : vector<2x768xf32>
    %89 = vector.extract_strided_slice %59 {offsets = [0, 5], sizes = [2, 1], strides = [1, 1]} : vector<2x8xf32> to vector<2x1xf32>
    %c0_29 = arith.constant 0 : index
    %c3840_30 = arith.constant 3840 : index
    %90 = vector.load %arg1[%c0_29, %c3840_30] : memref<2x6144xbf16, #tpu.memory_space<vmem>>, vector<2x768xbf16>
    %91 = arith.extf %90 : vector<2x768xbf16> to vector<2x768xf32>
    %92 = vector.broadcast %89 : vector<2x1xf32> to vector<2x768xf32>
    %93 = arith.mulf %92, %91 : vector<2x768xf32>
    %94 = arith.addf %88, %93 : vector<2x768xf32>
    %95 = vector.extract_strided_slice %59 {offsets = [0, 6], sizes = [2, 1], strides = [1, 1]} : vector<2x8xf32> to vector<2x1xf32>
    %c0_31 = arith.constant 0 : index
    %c4608_32 = arith.constant 4608 : index
    %96 = vector.load %arg1[%c0_31, %c4608_32] : memref<2x6144xbf16, #tpu.memory_space<vmem>>, vector<2x768xbf16>
    %97 = arith.extf %96 : vector<2x768xbf16> to vector<2x768xf32>
    %98 = vector.broadcast %95 : vector<2x1xf32> to vector<2x768xf32>
    %99 = arith.mulf %98, %97 : vector<2x768xf32>
    %100 = arith.addf %94, %99 : vector<2x768xf32>
    %101 = vector.extract_strided_slice %59 {offsets = [0, 7], sizes = [2, 1], strides = [1, 1]} : vector<2x8xf32> to vector<2x1xf32>
    %c0_33 = arith.constant 0 : index
    %c5376_34 = arith.constant 5376 : index
    %102 = vector.load %arg1[%c0_33, %c5376_34] : memref<2x6144xbf16, #tpu.memory_space<vmem>>, vector<2x768xbf16>
    %103 = arith.extf %102 : vector<2x768xbf16> to vector<2x768xf32>
    %104 = vector.broadcast %101 : vector<2x1xf32> to vector<2x768xf32>
    %105 = arith.mulf %104, %103 : vector<2x768xf32>
    %106 = arith.addf %100, %105 : vector<2x768xf32>
    %107 = arith.truncf %106 : vector<2x768xf32> to vector<2x768xbf16>
    %c0_35 = arith.constant 0 : index
    %c0_36 = arith.constant 0 : index
    %108 = vector.load %arg3[%c0_35, %c0_36] : memref<768x16xbf16, #tpu.memory_space<vmem>>, vector<768x16xbf16>
    %cst_37 = arith.constant dense<0.000000e+00> : vector<2x16xf32>
    %109 = tpu.matmul %107, %108, %cst_37 {dimension_numbers = #tpu.dot_dimension_numbers<[1], [0], [0], [1], [0, 0, 1, 1], [], []>} : vector<2x768xbf16>, vector<768x16xbf16>, vector<2x16xf32> -> vector<2x16xf32>
    %c0_38 = arith.constant 0 : index
    %c0_39 = arith.constant 0 : index
    %110 = vector.load %arg4[%c0_38, %c0_39] : memref<1x16xf32, #tpu.memory_space<vmem>>, vector<1x16xf32>
    %111 = vector.broadcast %110 : vector<1x16xf32> to vector<2x16xf32>
    %112 = arith.addf %109, %111 : vector<2x16xf32>
    %cst_40 = arith.constant 0.000000e+00 : f32
    %113 = vector.broadcast %cst_40 : f32 to vector<2x16xf32>
    %114 = arith.maximumf %112, %113 : vector<2x16xf32>
    %c0_41 = arith.constant 0 : index
    %c0_42 = arith.constant 0 : index
    %115 = vector.load %arg5[%c0_41, %c0_42] : memref<2x16xf32, #tpu.memory_space<vmem>>, vector<2x16xf32>
    tpu.vector_store %arg5[%c0_41, %c0_42], %114 {strides = array<i32>} : memref<2x16xf32, #tpu.memory_space<vmem>>, vector<2x16xf32>,
    return
  }
  func.func @transform_0(%arg0: i32) -> (i32, i32) {
    %c0_i32 = arith.constant 0 : i32
    %c0_i32_0 = arith.constant 0 : i32
    return %arg0, %c0_i32 : i32, i32
  }
  func.func @transform_1(%arg0: i32) -> (i32, i32) {
    %c0_i32 = arith.constant 0 : i32
    %c0_i32_0 = arith.constant 0 : i32
    %c0_i32_1 = arith.constant 0 : i32
    return %c0_i32, %c0_i32_0 : i32, i32
  }
  func.func @transform_2(%arg0: i32) -> (i32, i32) {
    %c0_i32 = arith.constant 0 : i32
    %c0_i32_0 = arith.constant 0 : i32
    %c0_i32_1 = arith.constant 0 : i32
    return %c0_i32, %c0_i32_0 : i32, i32
  }
  func.func @transform_3(%arg0: i32) -> (i32, i32) {
    %c0_i32 = arith.constant 0 : i32
    %c0_i32_0 = arith.constant 0 : i32
    %c0_i32_1 = arith.constant 0 : i32
    return %c0_i32, %c0_i32_0 : i32, i32
  }
  func.func @transform_4(%arg0: i32) -> (i32, i32) {
    %c0_i32 = arith.constant 0 : i32
    %c0_i32_0 = arith.constant 0 : i32
    return %arg0, %c0_i32 : i32, i32
  }
}

</mosaic_0001>

<llo_original>
// kernel: tpu_custom_call.1
$region0: #{tpu_custom_call.1}
  #allocation0 [shape = 'u32[]', space=smem, size = 0x4, offset = 0x4, fixed_abs, tag = 'smem constant byte address 0x4 - core index']
  #allocation1 [shape = 'u32[144,128]{1,0:T(1,128)}', space=vmem, size = 0x12000, scoped, tag = 'internal scratch']
  %s0 = inlined_call_operand.vmem [shape: bf16[2,6144], index: 0, kind: input, shape index: {}]
  %s1 = inlined_call_operand.vmem [shape: f32[1,768], index: 1, kind: input, shape index: {}]
  %s2 = inlined_call_operand.vmem [shape: bf16[768,16], index: 2, kind: input, shape index: {}]
  %s3 = inlined_call_operand.vmem [shape: f32[1,16], index: 3, kind: input, shape index: {}]
  %s4 = inlined_call_operand.hbm [shape: f32[2,16], index: 4, kind: output, shape index: {}]
  %s5 = sld [smem:[#allocation0]]
  $region26: #{tpu_custom_call.1} parent=0
    _
  %s7 = ssub.s32 1, %s5
  %s8 = scalar_select 0, %s7, %s5
  $region1: #{tpu_custom_call.1} parent=0
    #allocation2 [shape = 'u8[1024]{0}', space=vmem, size = 0x400, scoped, tag = 'output window, operand 0, single buffered']
    #allocation3 [shape = 's32[1]{0}', space=sflag, size = 0x4, scoped, tag = 'scoped memory for tpu_custom_call.1']
    %9 = vsyncpa [#allocation3], 0
    // Predicated region
    $region2: #{tpu_custom_call.1} parent=1 // pred_check
      _
    $region3: #{tpu_custom_call.1} parent=1 // pred_check_branch
      %11 = sbr.rel (0) target = $region5
    $region4: #{tpu_custom_call.1} parent=1 // pred_region
      _
    $region5: #{tpu_custom_call.1} parent=1 // pred_fallthru
      _
    // Predicated region
    $region6: #{tpu_custom_call.1} parent=1 // pred_check
      _
    $region7: #{tpu_custom_call.1} parent=1 // pred_check_branch
      %13 = sbr.rel (0) target = $region9
    $region8: #{tpu_custom_call.1} parent=1 // pred_region
      _
    $region9: #{tpu_custom_call.1} parent=1 // pred_fallthru
      _
    // Predicated region
    $region10: #{tpu_custom_call.1} parent=1 // pred_check
      _
    $region11: #{tpu_custom_call.1} parent=1 // pred_check_branch
      %15 = sbr.rel (0) target = $region13
    $region12: #{tpu_custom_call.1} parent=1 // pred_region
      _
    $region13: #{tpu_custom_call.1} parent=1 // pred_fallthru
      _
    // Predicated region
    $region14: #{tpu_custom_call.1} parent=1 // pred_check
      _
    $region15: #{tpu_custom_call.1} parent=1 // pred_check_branch
      %17 = sbr.rel (0) target = $region17
    $region16: #{tpu_custom_call.1} parent=1 // pred_region
      _
    $region17: #{tpu_custom_call.1} parent=1 // pred_fallthru
      _
    %v19 = vld [vmem:[%s1] sm:$0x3f]
    %v20 = vld [vmem:[%s0] sm:$0x3f]
    %v21 = vunpack.c.l.bf16 %v20
    %v22 = vunpack.c.h.bf16 %v20
    %v24 = vlaneseq
    %v25 = vshrl.u32 %v24, 7
    %v26 = vsub.s32 0, %v25
    %v27 = vrot.slane %v19, %v26
    %v28 = vlaneseq
    %v29 = vshrl.u32 %v28, 7
    %v30 = vsub.s32 1, %v29
    %v31 = vrot.slane %v19, %v30
    %v32 = vlaneseq
    %v33 = vshrl.u32 %v32, 7
    %v34 = vsub.s32 2, %v33
    %v35 = vrot.slane %v19, %v34
    %v36 = vlaneseq
    %v37 = vshrl.u32 %v36, 7
    %v38 = vsub.s32 3, %v37
    %v39 = vrot.slane %v19, %v38
    %v40 = vlaneseq
    %v41 = vshrl.u32 %v40, 7
    %v42 = vsub.s32 4, %v41
    %v43 = vrot.slane %v19, %v42
    %v44 = vlaneseq
    %v45 = vshrl.u32 %v44, 7
    %v46 = vsub.s32 5, %v45
    %v47 = vrot.slane %v19, %v46
    %v48 = vcombine.low %v27, %v31
    %v49 = vcombine.low %v35, %v39
    %v51 = vunpack.c.l.s4 1983009808
    %v52 = vunpack.c.0.s8 %v51
    %v53 = vlaneseq
    %v54 = vshrl.u32 %v53, 7
    %v55 = vsub.s32 %v52, %v54
    %v56 = vrot.slane %v48, %v55
    %v58 = vunpack.c.l.s4 1983009808
    %v59 = vunpack.c.0.s8 %v58
    %v60 = vlaneseq
    %v61 = vshrl.u32 %v60, 7
    %v62 = vsub.s32 %v59, %v61
    %v63 = vrot.slane %v49, %v62
    %v64 = vcombine.low %v56, %v63
    %v65 = vcombine.low %v43, %v47
    %v67 = vunpack.c.l.s4 1983009808
    %v68 = vunpack.c.0.s8 %v67
    %v69 = vlaneseq
    %v70 = vshrl.u32 %v69, 7
    %v71 = vsub.s32 %v68, %v70
    %v72 = vrot.slane %v65, %v71
    %v75 = vmul.f32 %v21, %v64
    %v76 = vmul.f32 %v22, %v72
    %v79 = vcombine.high %v75, %v75
    %v81 = vunpack.c.l.s4 1983009808
    %v82 = vunpack.c.0.s8 %v81
    %v83 = vlaneseq
    %v84 = vshrl.u32 %v83, 7
    %v85 = vsub.s32 %v82, %v84
    %v86 = vrot.slane %v75, %v85
    %v88 = vunpack.c.l.s4 1983009808
    %v89 = vunpack.c.0.s8 %v88
    %v90 = vlaneseq
    %v91 = vshrl.u32 %v90, 7
    %v92 = vsub.s32 %v89, %v91
    %v93 = vrot.slane %v79, %v92
    %v94 = vcombine.high %v86, %v86
    %v95 = vcombine.high %v93, %v93
    %v97 = vunpack.c.l.s4 1983009808
    %v98 = vunpack.c.0.s8 %v97
    %v99 = vlaneseq
    %v100 = vshrl.u32 %v99, 7
    %v101 = vsub.s32 %v98, %v100
    %v102 = vrot.slane %v76, %v101
    %v103 = vcombine.high %v102, %v102
    %vm110 = vcmask 1041408
    %v111 = vsel %vm110, %v86, 0.0
    %v112 = vsel %vm110, %v94, 0.0
    %v113 = vadd.f32 %v111, %v112
    %v114 = vsel %vm110, %v93, 0.0
    %v115 = vadd.f32 %v113, %v114
    %v116 = vsel %vm110, %v95, 0.0
    %v117 = vadd.f32 %v115, %v116
    %v118 = vsel %vm110, %v102, 0.0
    %v119 = vadd.f32 %v117, %v118
    %v120 = vsel %vm110, %v103, 0.0
    %v121 = vadd.f32 %v119, %v120
    %122 = vadd.xlane.f32.xlu0 %v121
    %v123 = vpop.xlane.xlu0 %122
    %v124 = vld [vmem:[%s0 + $0x6] sm:$0x3f]
    %v125 = vunpack.c.l.bf16 %v124
    %v126 = vunpack.c.h.bf16 %v124
    %v127 = vmul.f32 %v125, %v64
    %v128 = vmul.f32 %v126, %v72
    %v131 = vcombine.high %v127, %v127
    %v133 = vunpack.c.l.s4 1983009808
    %v134 = vunpack.c.0.s8 %v133
    %v135 = vlaneseq
    %v136 = vshrl.u32 %v135, 7
    %v137 = vsub.s32 %v134, %v136
    %v138 = vrot.slane %v127, %v137
    %v140 = vunpack.c.l.s4 1983009808
    %v141 = vunpack.c.0.s8 %v140
    %v142 = vlaneseq
    %v143 = vshrl.u32 %v142, 7
    %v144 = vsub.s32 %v141, %v143
    %v145 = vrot.slane %v131, %v144
    %v146 = vcombine.high %v138, %v138
    %v147 = vcombine.high %v145, %v145
    %v149 = vunpack.c.l.s4 1983009808
    %v150 = vunpack.c.0.s8 %v149
    %v151 = vlaneseq
    %v152 = vshrl.u32 %v151, 7
    %v153 = vsub.s32 %v150, %v152
    %v154 = vrot.slane %v128, %v153
    %v155 = vcombine.high %v154, %v154
    %v162 = vsel %vm110, %v138, 0.0
    %v163 = vsel %vm110, %v146, 0.0
    %v164 = vadd.f32 %v162, %v163
    %v165 = vsel %vm110, %v145, 0.0
    %v166 = vadd.f32 %v164, %v165
    %v167 = vsel %vm110, %v147, 0.0
    %v168 = vadd.f32 %v166, %v167
    %v169 = vsel %vm110, %v154, 0.0
    %v170 = vadd.f32 %v168, %v169
    %v171 = vsel %vm110, %v155, 0.0
    %v172 = vadd.f32 %v170, %v171
    %173 = vadd.xlane.f32.xlu0 %v172
    %v174 = vpop.xlane.xlu0 %173
    %v175 = vld [vmem:[%s0 + $0xc] sm:$0x3f]
    %v176 = vunpack.c.l.bf16 %v175
    %v177 = vunpack.c.h.bf16 %v175
    %v178 = vmul.f32 %v176, %v64
    %v179 = vmul.f32 %v177, %v72
    %v182 = vcombine.high %v178, %v178
    %v184 = vunpack.c.l.s4 1983009808
    %v185 = vunpack.c.0.s8 %v184
    %v186 = vlaneseq
    %v187 = vshrl.u32 %v186, 7
    %v188 = vsub.s32 %v185, %v187
    %v189 = vrot.slane %v178, %v188
    %v191 = vunpack.c.l.s4 1983009808
    %v192 = vunpack.c.0.s8 %v191
    %v193 = vlaneseq
    %v194 = vshrl.u32 %v193, 7
    %v195 = vsub.s32 %v192, %v194
    %v196 = vrot.slane %v182, %v195
    %v197 = vcombine.high %v189, %v189
    %v198 = vcombine.high %v196, %v196
    %v200 = vunpack.c.l.s4 1983009808
    %v201 = vunpack.c.0.s8 %v200
    %v202 = vlaneseq
    %v203 = vshrl.u32 %v202, 7
    %v204 = vsub.s32 %v201, %v203
    %v205 = vrot.slane %v179, %v204
    %v206 = vcombine.high %v205, %v205
    %v213 = vsel %vm110, %v189, 0.0
    %v214 = vsel %vm110, %v197, 0.0
    %v215 = vadd.f32 %v213, %v214
    %v216 = vsel %vm110, %v196, 0.0
    %v217 = vadd.f32 %v215, %v216
    %v218 = vsel %vm110, %v198, 0.0
    %v219 = vadd.f32 %v217, %v218
    %v220 = vsel %vm110, %v205, 0.0
    %v221 = vadd.f32 %v219, %v220
    %v222 = vsel %vm110, %v206, 0.0
    %v223 = vadd.f32 %v221, %v222
    %224 = vadd.xlane.f32.xlu0 %v223
    %v225 = vpop.xlane.xlu0 %224
    %v226 = vld [vmem:[%s0 + $0x12] sm:$0x3f]
    %v227 = vunpack.c.l.bf16 %v226
    %v228 = vunpack.c.h.bf16 %v226
    %v229 = vmul.f32 %v227, %v64
    %v230 = vmul.f32 %v228, %v72
    %v233 = vcombine.high %v229, %v229
    %v235 = vunpack.c.l.s4 1983009808
    %v236 = vunpack.c.0.s8 %v235
    %v237 = vlaneseq
    %v238 = vshrl.u32 %v237, 7
    %v239 = vsub.s32 %v236, %v238
    %v240 = vrot.slane %v229, %v239
    %v242 = vunpack.c.l.s4 1983009808
    %v243 = vunpack.c.0.s8 %v242
    %v244 = vlaneseq
    %v245 = vshrl.u32 %v244, 7
    %v246 = vsub.s32 %v243, %v245
    %v247 = vrot.slane %v233, %v246
    %v248 = vcombine.high %v240, %v240
    %v249 = vcombine.high %v247, %v247
    %v251 = vunpack.c.l.s4 1983009808
    %v252 = vunpack.c.0.s8 %v251
    %v253 = vlaneseq
    %v254 = vshrl.u32 %v253, 7
    %v255 = vsub.s32 %v252, %v254
    %v256 = vrot.slane %v230, %v255
    %v257 = vcombine.high %v256, %v256
    %v264 = vsel %vm110, %v240, 0.0
    %v265 = vsel %vm110, %v248, 0.0
    %v266 = vadd.f32 %v264, %v265
    %v267 = vsel %vm110, %v247, 0.0
    %v268 = vadd.f32 %v266, %v267
    %v269 = vsel %vm110, %v249, 0.0
    %v270 = vadd.f32 %v268, %v269
    %v271 = vsel %vm110, %v256, 0.0
    %v272 = vadd.f32 %v270, %v271
    %v273 = vsel %vm110, %v257, 0.0
    %v274 = vadd.f32 %v272, %v273
    %275 = vadd.xlane.f32.xlu0 %v274
    %v276 = vpop.xlane.xlu0 %275
    %v277 = vld [vmem:[%s0 + $0x18] sm:$0x3f]
    %v278 = vunpack.c.l.bf16 %v277
    %v279 = vunpack.c.h.bf16 %v277
    %v280 = vmul.f32 %v278, %v64
    %v281 = vmul.f32 %v279, %v72
    %v284 = vcombine.high %v280, %v280
    %v286 = vunpack.c.l.s4 1983009808
    %v287 = vunpack.c.0.s8 %v286
    %v288 = vlaneseq
    %v289 = vshrl.u32 %v288, 7
    %v290 = vsub.s32 %v287, %v289
    %v291 = vrot.slane %v280, %v290
    %v293 = vunpack.c.l.s4 1983009808
    %v294 = vunpack.c.0.s8 %v293
    %v295 = vlaneseq
    %v296 = vshrl.u32 %v295, 7
    %v297 = vsub.s32 %v294, %v296
    %v298 = vrot.slane %v284, %v297
    %v299 = vcombine.high %v291, %v291
    %v300 = vcombine.high %v298, %v298
    %v302 = vunpack.c.l.s4 1983009808
    %v303 = vunpack.c.0.s8 %v302
    %v304 = vlaneseq
    %v305 = vshrl.u32 %v304, 7
    %v306 = vsub.s32 %v303, %v305
    %v307 = vrot.slane %v281, %v306
    %v308 = vcombine.high %v307, %v307
    %v315 = vsel %vm110, %v291, 0.0
    %v316 = vsel %vm110, %v299, 0.0
    %v317 = vadd.f32 %v315, %v316
    %v318 = vsel %vm110, %v298, 0.0
    %v319 = vadd.f32 %v317, %v318
    %v320 = vsel %vm110, %v300, 0.0
    %v321 = vadd.f32 %v319, %v320
    %v322 = vsel %vm110, %v307, 0.0
    %v323 = vadd.f32 %v321, %v322
    %v324 = vsel %vm110, %v308, 0.0
    %v325 = vadd.f32 %v323, %v324
    %326 = vadd.xlane.f32.xlu0 %v325
    %v327 = vpop.xlane.xlu0 %326
    %v328 = vld [vmem:[%s0 + $0x1e] sm:$0x3f]
    %v329 = vunpack.c.l.bf16 %v328
    %v330 = vunpack.c.h.bf16 %v328
    %v331 = vmul.f32 %v329, %v64
    %v332 = vmul.f32 %v330, %v72
    %v335 = vcombine.high %v331, %v331
    %v337 = vunpack.c.l.s4 1983009808
    %v338 = vunpack.c.0.s8 %v337
    %v339 = vlaneseq
    %v340 = vshrl.u32 %v339, 7
    %v341 = vsub.s32 %v338, %v340
    %v342 = vrot.slane %v331, %v341
    %v344 = vunpack.c.l.s4 1983009808
    %v345 = vunpack.c.0.s8 %v344
    %v346 = vlaneseq
    %v347 = vshrl.u32 %v346, 7
    %v348 = vsub.s32 %v345, %v347
    %v349 = vrot.slane %v335, %v348
    %v350 = vcombine.high %v342, %v342
    %v351 = vcombine.high %v349, %v349
    %v353 = vunpack.c.l.s4 1983009808
    %v354 = vunpack.c.0.s8 %v353
    %v355 = vlaneseq
    %v356 = vshrl.u32 %v355, 7
    %v357 = vsub.s32 %v354, %v356
    %v358 = vrot.slane %v332, %v357
    %v359 = vcombine.high %v358, %v358
    %v366 = vsel %vm110, %v342, 0.0
    %v367 = vsel %vm110, %v350, 0.0
    %v368 = vadd.f32 %v366, %v367
    %v369 = vsel %vm110, %v349, 0.0
    %v370 = vadd.f32 %v368, %v369
    %v371 = vsel %vm110, %v351, 0.0
    %v372 = vadd.f32 %v370, %v371
    %v373 = vsel %vm110, %v358, 0.0
    %v374 = vadd.f32 %v372, %v373
    %v375 = vsel %vm110, %v359, 0.0
    %v376 = vadd.f32 %v374, %v375
    %377 = vadd.xlane.f32.xlu0 %v376
    %v378 = vpop.xlane.xlu0 %377
    %v379 = vld [vmem:[%s0 + $0x24] sm:$0x3f]
    %v380 = vunpack.c.l.bf16 %v379
    %v381 = vunpack.c.h.bf16 %v379
    %v382 = vmul.f32 %v380, %v64
    %v383 = vmul.f32 %v381, %v72
    %v386 = vcombine.high %v382, %v382
    %v388 = vunpack.c.l.s4 1983009808
    %v389 = vunpack.c.0.s8 %v388
    %v390 = vlaneseq
    %v391 = vshrl.u32 %v390, 7
    %v392 = vsub.s32 %v389, %v391
    %v393 = vrot.slane %v382, %v392
    %v395 = vunpack.c.l.s4 1983009808
    %v396 = vunpack.c.0.s8 %v395
    %v397 = vlaneseq
    %v398 = vshrl.u32 %v397, 7
    %v399 = vsub.s32 %v396, %v398
    %v400 = vrot.slane %v386, %v399
    %v401 = vcombine.high %v393, %v393
    %v402 = vcombine.high %v400, %v400
    %v404 = vunpack.c.l.s4 1983009808
    %v405 = vunpack.c.0.s8 %v404
    %v406 = vlaneseq
    %v407 = vshrl.u32 %v406, 7
    %v408 = vsub.s32 %v405, %v407
    %v409 = vrot.slane %v383, %v408
    %v410 = vcombine.high %v409, %v409
    %v417 = vsel %vm110, %v393, 0.0
    %v418 = vsel %vm110, %v401, 0.0
    %v419 = vadd.f32 %v417, %v418
    %v420 = vsel %vm110, %v400, 0.0
    %v421 = vadd.f32 %v419, %v420
    %v422 = vsel %vm110, %v402, 0.0
    %v423 = vadd.f32 %v421, %v422
    %v424 = vsel %vm110, %v409, 0.0
    %v425 = vadd.f32 %v423, %v424
    %v426 = vsel %vm110, %v410, 0.0
    %v427 = vadd.f32 %v425, %v426
    %428 = vadd.xlane.f32.xlu0 %v427
    %v429 = vpop.xlane.xlu0 %428
    %v430 = vld [vmem:[%s0 + $0x2a] sm:$0x3f]
    %v431 = vunpack.c.l.bf16 %v430
    %v432 = vunpack.c.h.bf16 %v430
    %v433 = vmul.f32 %v431, %v64
    %v434 = vmul.f32 %v432, %v72
    %v437 = vcombine.high %v433, %v433
    %v439 = vunpack.c.l.s4 1983009808
    %v440 = vunpack.c.0.s8 %v439
    %v441 = vlaneseq
    %v442 = vshrl.u32 %v441, 7
    %v443 = vsub.s32 %v440, %v442
    %v444 = vrot.slane %v433, %v443
    %v446 = vunpack.c.l.s4 1983009808
    %v447 = vunpack.c.0.s8 %v446
    %v448 = vlaneseq
    %v449 = vshrl.u32 %v448, 7
    %v450 = vsub.s32 %v447, %v449
    %v451 = vrot.slane %v437, %v450
    %v452 = vcombine.high %v444, %v444
    %v453 = vcombine.high %v451, %v451
    %v455 = vunpack.c.l.s4 1983009808
    %v456 = vunpack.c.0.s8 %v455
    %v457 = vlaneseq
    %v458 = vshrl.u32 %v457, 7
    %v459 = vsub.s32 %v456, %v458
    %v460 = vrot.slane %v434, %v459
    %v461 = vcombine.high %v460, %v460
    %v468 = vsel %vm110, %v444, 0.0
    %v469 = vsel %vm110, %v452, 0.0
    %v470 = vadd.f32 %v468, %v469
    %v471 = vsel %vm110, %v451, 0.0
    %v472 = vadd.f32 %v470, %v471
    %v473 = vsel %vm110, %v453, 0.0
    %v474 = vadd.f32 %v472, %v473
    %v475 = vsel %vm110, %v460, 0.0
    %v476 = vadd.f32 %v474, %v475
    %v477 = vsel %vm110, %v461, 0.0
    %v478 = vadd.f32 %v476, %v477
    %479 = vadd.xlane.f32.xlu0 %v478
    %v480 = vpop.xlane.xlu0 %479
    %vm481 = vcmask 7168
    %v482 = vsel %vm481, %v123, %v174
    %vm483 = vcmask 15360
    %v484 = vsel %vm483, %v482, %v225
    %vm485 = vcmask 23552
    %v486 = vsel %vm485, %v484, %v276
    %vm487 = vcmask 31744
    %v488 = vsel %vm487, %v486, %v327
    %vm489 = vcmask 39936
    %v490 = vsel %vm489, %v488, %v378
    %vm491 = vcmask 48128
    %v492 = vsel %vm491, %v490, %v429
    %vm493 = vcmask 56320
    %v494 = vsel %vm493, %v492, %v480
    %vm495 = vcmask 58368
    %v496 = vsel %vm495, %v494, -inf
    %497 = vmax.xlane.f32.xlu0 %v496
    %v498 = vpop.xlane.xlu0 %497
    %v499 = vsub.f32 %v494, %v498
    %v500 = vmul.f32 %v499, 1.442695
    %v501 = vpow.pop %v500
    %v502 = vsel %vm495, %v501, 0.0
    %503 = vadd.xlane.f32.xlu0 %v502
    %v504 = vpop.xlane.xlu0 %503
    %v505 = vrcp.pop %v504
    %v506 = vmul.f32 %v501, %v505
    %508 = vset.pattern.permute.xlu0 0
    %509 = vperm.xlu0 %508, %v506
    %v510 = vpop.permute.xlu0 %509
    %v514 = vcombine.high %v21, %v21
    %v516 = vunpack.c.l.s4 1983009808
    %v517 = vunpack.c.0.s8 %v516
    %v518 = vlaneseq
    %v519 = vshrl.u32 %v518, 7
    %v520 = vsub.s32 %v517, %v519
    %v521 = vrot.slane %v21, %v520
    %v523 = vunpack.c.l.s4 1983009808
    %v524 = vunpack.c.0.s8 %v523
    %v525 = vlaneseq
    %v526 = vshrl.u32 %v525, 7
    %v527 = vsub.s32 %v524, %v526
    %v528 = vrot.slane %v514, %v527
    %v529 = vcombine.high %v521, %v521
    %v530 = vcombine.high %v528, %v528
    %v532 = vunpack.c.l.s4 1983009808
    %v533 = vunpack.c.0.s8 %v532
    %v534 = vlaneseq
    %v535 = vshrl.u32 %v534, 7
    %v536 = vsub.s32 %v533, %v535
    %v537 = vrot.slane %v22, %v536
    %v538 = vcombine.high %v537, %v537
    %v545 = vmul.f32 %v510, %v521
    %v546 = vmul.f32 %v510, %v529
    %v547 = vmul.f32 %v510, %v528
    %v548 = vmul.f32 %v510, %v530
    %v549 = vmul.f32 %v510, %v537
    %v550 = vmul.f32 %v510, %v538
    %551 = vset.pattern.permute.xlu0 1
    %552 = vperm.xlu0 %551, %v506
    %v553 = vpop.permute.xlu0 %552
    %v557 = vcombine.high %v125, %v125
    %v559 = vunpack.c.l.s4 1983009808
    %v560 = vunpack.c.0.s8 %v559
    %v561 = vlaneseq
    %v562 = vshrl.u32 %v561, 7
    %v563 = vsub.s32 %v560, %v562
    %v564 = vrot.slane %v125, %v563
    %v566 = vunpack.c.l.s4 1983009808
    %v567 = vunpack.c.0.s8 %v566
    %v568 = vlaneseq
    %v569 = vshrl.u32 %v568, 7
    %v570 = vsub.s32 %v567, %v569
    %v571 = vrot.slane %v557, %v570
    %v572 = vcombine.high %v564, %v564
    %v573 = vcombine.high %v571, %v571
    %v575 = vunpack.c.l.s4 1983009808
    %v576 = vunpack.c.0.s8 %v575
    %v577 = vlaneseq
    %v578 = vshrl.u32 %v577, 7
    %v579 = vsub.s32 %v576, %v578
    %v580 = vrot.slane %v126, %v579
    %v581 = vcombine.high %v580, %v580
    %v588 = vmul.f32 %v553, %v564
    %v589 = vmul.f32 %v553, %v572
    %v590 = vmul.f32 %v553, %v571
    %v591 = vmul.f32 %v553, %v573
    %v592 = vmul.f32 %v553, %v580
    %v593 = vmul.f32 %v553, %v581
    %v594 = vadd.f32 %v545, %v588
    %v595 = vadd.f32 %v546, %v589
    %v596 = vadd.f32 %v547, %v590
    %v597 = vadd.f32 %v548, %v591
    %v598 = vadd.f32 %v549, %v592
    %v599 = vadd.f32 %v550, %v593
    %600 = vset.pattern.permute.xlu0 2
    %601 = vperm.xlu0 %600, %v506
    %v602 = vpop.permute.xlu0 %601
    %v606 = vcombine.high %v176, %v176
    %v608 = vunpack.c.l.s4 1983009808
    %v609 = vunpack.c.0.s8 %v608
    %v610 = vlaneseq
    %v611 = vshrl.u32 %v610, 7
    %v612 = vsub.s32 %v609, %v611
    %v613 = vrot.slane %v176, %v612
    %v615 = vunpack.c.l.s4 1983009808
    %v616 = vunpack.c.0.s8 %v615
    %v617 = vlaneseq
    %v618 = vshrl.u32 %v617, 7
    %v619 = vsub.s32 %v616, %v618
    %v620 = vrot.slane %v606, %v619
    %v621 = vcombine.high %v613, %v613
    %v622 = vcombine.high %v620, %v620
    %v624 = vunpack.c.l.s4 1983009808
    %v625 = vunpack.c.0.s8 %v624
    %v626 = vlaneseq
    %v627 = vshrl.u32 %v626, 7
    %v628 = vsub.s32 %v625, %v627
    %v629 = vrot.slane %v177, %v628
    %v630 = vcombine.high %v629, %v629
    %v637 = vmul.f32 %v602, %v613
    %v638 = vmul.f32 %v602, %v621
    %v639 = vmul.f32 %v602, %v620
    %v640 = vmul.f32 %v602, %v622
    %v641 = vmul.f32 %v602, %v629
    %v642 = vmul.f32 %v602, %v630
    %v643 = vadd.f32 %v594, %v637
    %v644 = vadd.f32 %v595, %v638
    %v645 = vadd.f32 %v596, %v639
    %v646 = vadd.f32 %v597, %v640
    %v647 = vadd.f32 %v598, %v641
    %v648 = vadd.f32 %v599, %v642
    %649 = vset.pattern.permute.xlu0 3
    %650 = vperm.xlu0 %649, %v506
    %v651 = vpop.permute.xlu0 %650
    %v655 = vcombine.high %v227, %v227
    %v657 = vunpack.c.l.s4 1983009808
    %v658 = vunpack.c.0.s8 %v657
    %v659 = vlaneseq
    %v660 = vshrl.u32 %v659, 7
    %v661 = vsub.s32 %v658, %v660
    %v662 = vrot.slane %v227, %v661
    %v664 = vunpack.c.l.s4 1983009808
    %v665 = vunpack.c.0.s8 %v664
    %v666 = vlaneseq
    %v667 = vshrl.u32 %v666, 7
    %v668 = vsub.s32 %v665, %v667
    %v669 = vrot.slane %v655, %v668
    %v670 = vcombine.high %v662, %v662
    %v671 = vcombine.high %v669, %v669
    %v673 = vunpack.c.l.s4 1983009808
    %v674 = vunpack.c.0.s8 %v673
    %v675 = vlaneseq
    %v676 = vshrl.u32 %v675, 7
    %v677 = vsub.s32 %v674, %v676
    %v678 = vrot.slane %v228, %v677
    %v679 = vcombine.high %v678, %v678
    %v686 = vmul.f32 %v651, %v662
    %v687 = vmul.f32 %v651, %v670
    %v688 = vmul.f32 %v651, %v669
    %v689 = vmul.f32 %v651, %v671
    %v690 = vmul.f32 %v651, %v678
    %v691 = vmul.f32 %v651, %v679
    %v692 = vadd.f32 %v643, %v686
    %v693 = vadd.f32 %v644, %v687
    %v694 = vadd.f32 %v645, %v688
    %v695 = vadd.f32 %v646, %v689
    %v696 = vadd.f32 %v647, %v690
    %v697 = vadd.f32 %v648, %v691
    %698 = vset.pattern.permute.xlu0 4
    %699 = vperm.xlu0 %698, %v506
    %v700 = vpop.permute.xlu0 %699
    %v704 = vcombine.high %v278, %v278
    %v706 = vunpack.c.l.s4 1983009808
    %v707 = vunpack.c.0.s8 %v706
    %v708 = vlaneseq
    %v709 = vshrl.u32 %v708, 7
    %v710 = vsub.s32 %v707, %v709
    %v711 = vrot.slane %v278, %v710
    %v713 = vunpack.c.l.s4 1983009808
    %v714 = vunpack.c.0.s8 %v713
    %v715 = vlaneseq
    %v716 = vshrl.u32 %v715, 7
    %v717 = vsub.s32 %v714, %v716
    %v718 = vrot.slane %v704, %v717
    %v719 = vcombine.high %v711, %v711
    %v720 = vcombine.high %v718, %v718
    %v722 = vunpack.c.l.s4 1983009808
    %v723 = vunpack.c.0.s8 %v722
    %v724 = vlaneseq
    %v725 = vshrl.u32 %v724, 7
    %v726 = vsub.s32 %v723, %v725
    %v727 = vrot.slane %v279, %v726
    %v728 = vcombine.high %v727, %v727
    %v735 = vmul.f32 %v700, %v711
    %v736 = vmul.f32 %v700, %v719
    %v737 = vmul.f32 %v700, %v718
    %v738 = vmul.f32 %v700, %v720
    %v739 = vmul.f32 %v700, %v727
    %v740 = vmul.f32 %v700, %v728
    %v741 = vadd.f32 %v692, %v735
    %v742 = vadd.f32 %v693, %v736
    %v743 = vadd.f32 %v694, %v737
    %v744 = vadd.f32 %v695, %v738
    %v745 = vadd.f32 %v696, %v739
    %v746 = vadd.f32 %v697, %v740
    %747 = vset.pattern.permute.xlu0 5
    %748 = vperm.xlu0 %747, %v506
    %v749 = vpop.permute.xlu0 %748
    %v753 = vcombine.high %v329, %v329
    %v755 = vunpack.c.l.s4 1983009808
    %v756 = vunpack.c.0.s8 %v755
    %v757 = vlaneseq
    %v758 = vshrl.u32 %v757, 7
    %v759 = vsub.s32 %v756, %v758
    %v760 = vrot.slane %v329, %v759
    %v762 = vunpack.c.l.s4 1983009808
    %v763 = vunpack.c.0.s8 %v762
    %v764 = vlaneseq
    %v765 = vshrl.u32 %v764, 7
    %v766 = vsub.s32 %v763, %v765
    %v767 = vrot.slane %v753, %v766
    %v768 = vcombine.high %v760, %v760
    %v769 = vcombine.high %v767, %v767
    %v771 = vunpack.c.l.s4 1983009808
    %v772 = vunpack.c.0.s8 %v771
    %v773 = vlaneseq
    %v774 = vshrl.u32 %v773, 7
    %v775 = vsub.s32 %v772, %v774
    %v776 = vrot.slane %v330, %v775
    %v777 = vcombine.high %v776, %v776
    %v784 = vmul.f32 %v749, %v760
    %v785 = vmul.f32 %v749, %v768
    %v786 = vmul.f32 %v749, %v767
    %v787 = vmul.f32 %v749, %v769
    %v788 = vmul.f32 %v749, %v776
    %v789 = vmul.f32 %v749, %v777
    %v790 = vadd.f32 %v741, %v784
    %v791 = vadd.f32 %v742, %v785
    %v792 = vadd.f32 %v743, %v786
    %v793 = vadd.f32 %v744, %v787
    %v794 = vadd.f32 %v745, %v788
    %v795 = vadd.f32 %v746, %v789
    %796 = vset.pattern.permute.xlu0 6
    %797 = vperm.xlu0 %796, %v506
    %v798 = vpop.permute.xlu0 %797
    %v802 = vcombine.high %v380, %v380
    %v804 = vunpack.c.l.s4 1983009808
    %v805 = vunpack.c.0.s8 %v804
    %v806 = vlaneseq
    %v807 = vshrl.u32 %v806, 7
    %v808 = vsub.s32 %v805, %v807
    %v809 = vrot.slane %v380, %v808
    %v811 = vunpack.c.l.s4 1983009808
    %v812 = vunpack.c.0.s8 %v811
    %v813 = vlaneseq
    %v814 = vshrl.u32 %v813, 7
    %v815 = vsub.s32 %v812, %v814
    %v816 = vrot.slane %v802, %v815
    %v817 = vcombine.high %v809, %v809
    %v818 = vcombine.high %v816, %v816
    %v820 = vunpack.c.l.s4 1983009808
    %v821 = vunpack.c.0.s8 %v820
    %v822 = vlaneseq
    %v823 = vshrl.u32 %v822, 7
    %v824 = vsub.s32 %v821, %v823
    %v825 = vrot.slane %v381, %v824
    %v826 = vcombine.high %v825, %v825
    %v833 = vmul.f32 %v798, %v809
    %v834 = vmul.f32 %v798, %v817
    %v835 = vmul.f32 %v798, %v816
    %v836 = vmul.f32 %v798, %v818
    %v837 = vmul.f32 %v798, %v825
    %v838 = vmul.f32 %v798, %v826
    %v839 = vadd.f32 %v790, %v833
    %v840 = vadd.f32 %v791, %v834
    %v841 = vadd.f32 %v792, %v835
    %v842 = vadd.f32 %v793, %v836
    %v843 = vadd.f32 %v794, %v837
    %v844 = vadd.f32 %v795, %v838
    %845 = vset.pattern.permute.xlu0 7
    %846 = vperm.xlu0 %845, %v506
    %v847 = vpop.permute.xlu0 %846
    %v851 = vcombine.high %v431, %v431
    %v853 = vunpack.c.l.s4 1983009808
    %v854 = vunpack.c.0.s8 %v853
    %v855 = vlaneseq
    %v856 = vshrl.u32 %v855, 7
    %v857 = vsub.s32 %v854, %v856
    %v858 = vrot.slane %v431, %v857
    %v860 = vunpack.c.l.s4 1983009808
    %v861 = vunpack.c.0.s8 %v860
    %v862 = vlaneseq
    %v863 = vshrl.u32 %v862, 7
    %v864 = vsub.s32 %v861, %v863
    %v865 = vrot.slane %v851, %v864
    %v866 = vcombine.high %v858, %v858
    %v867 = vcombine.high %v865, %v865
    %v869 = vunpack.c.l.s4 1983009808
    %v870 = vunpack.c.0.s8 %v869
    %v871 = vlaneseq
    %v872 = vshrl.u32 %v871, 7
    %v873 = vsub.s32 %v870, %v872
    %v874 = vrot.slane %v432, %v873
    %v875 = vcombine.high %v874, %v874
    %v882 = vmul.f32 %v847, %v858
    %v883 = vmul.f32 %v847, %v866
    %v884 = vmul.f32 %v847, %v865
    %v885 = vmul.f32 %v847, %v867
    %v886 = vmul.f32 %v847, %v874
    %v887 = vmul.f32 %v847, %v875
    %v888 = vadd.f32 %v839, %v882
    %v889 = vadd.f32 %v840, %v883
    %v890 = vadd.f32 %v841, %v884
    %v891 = vadd.f32 %v842, %v885
    %v892 = vadd.f32 %v843, %v886
    %v893 = vadd.f32 %v844, %v887
    %v894 = vpack.c.bf16 %v888, %v888
    %v895 = vpack.c.bf16 %v889, %v889
    %v896 = vpack.c.bf16 %v890, %v890
    %v897 = vpack.c.bf16 %v891, %v891
    %v898 = vpack.c.bf16 %v892, %v892
    %v899 = vpack.c.bf16 %v893, %v893
    %v900 = vld [vmem:[%s2] sm:$0xf]
    %v901 = vld [vmem:[%s2 + $0x4] sm:$0xf]
    %v902 = vld [vmem:[%s2 + $0x8] sm:$0xf]
    %v903 = vld [vmem:[%s2 + $0xc] sm:$0xf]
    %v904 = vld [vmem:[%s2 + $0x10] sm:$0xf]
    %v905 = vld [vmem:[%s2 + $0x14] sm:$0xf]
    %v906 = vld [vmem:[%s2 + $0x18] sm:$0xf]
    %v907 = vld [vmem:[%s2 + $0x1c] sm:$0xf]
    %v908 = vld [vmem:[%s2 + $0x20] sm:$0xf]
    %v909 = vld [vmem:[%s2 + $0x24] sm:$0xf]
    %v910 = vld [vmem:[%s2 + $0x28] sm:$0xf]
    %v911 = vld [vmem:[%s2 + $0x2c] sm:$0xf]
    %v912 = vld [vmem:[%s2 + $0x30] sm:$0xf]
    %v913 = vld [vmem:[%s2 + $0x34] sm:$0xf]
    %v914 = vld [vmem:[%s2 + $0x38] sm:$0xf]
    %v915 = vld [vmem:[%s2 + $0x3c] sm:$0xf]
    %v916 = vld [vmem:[%s2 + $0x40] sm:$0xf]
    %v917 = vld [vmem:[%s2 + $0x44] sm:$0xf]
    %v918 = vld [vmem:[%s2 + $0x48] sm:$0xf]
    %v919 = vld [vmem:[%s2 + $0x4c] sm:$0xf]
    %v920 = vld [vmem:[%s2 + $0x50] sm:$0xf]
    %v921 = vld [vmem:[%s2 + $0x54] sm:$0xf]
    %v922 = vld [vmem:[%s2 + $0x58] sm:$0xf]
    %v923 = vld [vmem:[%s2 + $0x5c] sm:$0xf]
    %v924 = vld [vmem:[%s2 + $0x60] sm:$0xf]
    %v925 = vld [vmem:[%s2 + $0x64] sm:$0xf]
    %v926 = vld [vmem:[%s2 + $0x68] sm:$0xf]
    %v927 = vld [vmem:[%s2 + $0x6c] sm:$0xf]
    %v928 = vld [vmem:[%s2 + $0x70] sm:$0xf]
    %v929 = vld [vmem:[%s2 + $0x74] sm:$0xf]
    %v930 = vld [vmem:[%s2 + $0x78] sm:$0xf]
    %v931 = vld [vmem:[%s2 + $0x7c] sm:$0xf]
    %v932 = vld [vmem:[%s2 + $0x80] sm:$0xf]
    %v933 = vld [vmem:[%s2 + $0x84] sm:$0xf]
    %v934 = vld [vmem:[%s2 + $0x88] sm:$0xf]
    %v935 = vld [vmem:[%s2 + $0x8c] sm:$0xf]
    %v936 = vld [vmem:[%s2 + $0x90] sm:$0xf]
    %v937 = vld [vmem:[%s2 + $0x94] sm:$0xf]
    %v938 = vld [vmem:[%s2 + $0x98] sm:$0xf]
    %v939 = vld [vmem:[%s2 + $0x9c] sm:$0xf]
    %v940 = vld [vmem:[%s2 + $0xa0] sm:$0xf]
    %v941 = vld [vmem:[%s2 + $0xa4] sm:$0xf]
    %v942 = vld [vmem:[%s2 + $0xa8] sm:$0xf]
    %v943 = vld [vmem:[%s2 + $0xac] sm:$0xf]
    %v944 = vld [vmem:[%s2 + $0xb0] sm:$0xf]
    %v945 = vld [vmem:[%s2 + $0xb4] sm:$0xf]
    %v946 = vld [vmem:[%s2 + $0xb8] sm:$0xf]
    %v947 = vld [vmem:[%s2 + $0xbc] sm:$0xf]
    %v948 = vld [vmem:[%s2 + $0xc0] sm:$0xf]
    %v949 = vld [vmem:[%s2 + $0xc4] sm:$0xf]
    %v950 = vld [vmem:[%s2 + $0xc8] sm:$0xf]
    %v951 = vld [vmem:[%s2 + $0xcc] sm:$0xf]
    %v952 = vld [vmem:[%s2 + $0xd0] sm:$0xf]
    %v953 = vld [vmem:[%s2 + $0xd4] sm:$0xf]
    %v954 = vld [vmem:[%s2 + $0xd8] sm:$0xf]
    %v955 = vld [vmem:[%s2 + $0xdc] sm:$0xf]
    %v956 = vld [vmem:[%s2 + $0xe0] sm:$0xf]
    %v957 = vld [vmem:[%s2 + $0xe4] sm:$0xf]
    %v958 = vld [vmem:[%s2 + $0xe8] sm:$0xf]
    %v959 = vld [vmem:[%s2 + $0xec] sm:$0xf]
    %v960 = vld [vmem:[%s2 + $0xf0] sm:$0xf]
    %v961 = vld [vmem:[%s2 + $0xf4] sm:$0xf]
    %v962 = vld [vmem:[%s2 + $0xf8] sm:$0xf]
    %v963 = vld [vmem:[%s2 + $0xfc] sm:$0xf]
    %v964 = vld [vmem:[%s2 + $0x100] sm:$0xf]
    %v965 = vld [vmem:[%s2 + $0x104] sm:$0xf]
    %v966 = vld [vmem:[%s2 + $0x108] sm:$0xf]
    %v967 = vld [vmem:[%s2 + $0x10c] sm:$0xf]
    %v968 = vld [vmem:[%s2 + $0x110] sm:$0xf]
    %v969 = vld [vmem:[%s2 + $0x114] sm:$0xf]
    %v970 = vld [vmem:[%s2 + $0x118] sm:$0xf]
    %v971 = vld [vmem:[%s2 + $0x11c] sm:$0xf]
    %v972 = vld [vmem:[%s2 + $0x120] sm:$0xf]
    %v973 = vld [vmem:[%s2 + $0x124] sm:$0xf]
    %v974 = vld [vmem:[%s2 + $0x128] sm:$0xf]
    %v975 = vld [vmem:[%s2 + $0x12c] sm:$0xf]
    %v976 = vld [vmem:[%s2 + $0x130] sm:$0xf]
    %v977 = vld [vmem:[%s2 + $0x134] sm:$0xf]
    %v978 = vld [vmem:[%s2 + $0x138] sm:$0xf]
    %v979 = vld [vmem:[%s2 + $0x13c] sm:$0xf]
    %v980 = vld [vmem:[%s2 + $0x140] sm:$0xf]
    %v981 = vld [vmem:[%s2 + $0x144] sm:$0xf]
    %v982 = vld [vmem:[%s2 + $0x148] sm:$0xf]
    %v983 = vld [vmem:[%s2 + $0x14c] sm:$0xf]
    %v984 = vld [vmem:[%s2 + $0x150] sm:$0xf]
    %v985 = vld [vmem:[%s2 + $0x154] sm:$0xf]
    %v986 = vld [vmem:[%s2 + $0x158] sm:$0xf]
    %v987 = vld [vmem:[%s2 + $0x15c] sm:$0xf]
    %v988 = vld [vmem:[%s2 + $0x160] sm:$0xf]
    %v989 = vld [vmem:[%s2 + $0x164] sm:$0xf]
    %v990 = vld [vmem:[%s2 + $0x168] sm:$0xf]
    %v991 = vld [vmem:[%s2 + $0x16c] sm:$0xf]
    %v992 = vld [vmem:[%s2 + $0x170] sm:$0xf]
    %v993 = vld [vmem:[%s2 + $0x174] sm:$0xf]
    %v994 = vld [vmem:[%s2 + $0x178] sm:$0xf]
    %v995 = vld [vmem:[%s2 + $0x17c] sm:$0xf]
    %v996 = vld [vmem:[%s3] sm:$0x1]
    %v998 = vlaneseq
    %v999 = vshrl.u32 %v998, 7
    %v1000 = vsub.s32 0, %v999
    %v1001 = vrot.slane %v996, %v1000
    %v1099 = vunpack.c.l.b16 %v900
    %v1100 = vunpack.c.l.b16 %v901
    %v1101 = vunpack.c.l.b16 %v902
    %v1102 = vunpack.c.l.b16 %v903
    %v1103 = vunpack.c.l.b16 %v904
    %v1104 = vunpack.c.l.b16 %v905
    %v1105 = vunpack.c.l.b16 %v906
    %v1106 = vunpack.c.l.b16 %v907
    %v1107 = vunpack.c.l.b16 %v908
    %v1108 = vunpack.c.l.b16 %v909
    %v1109 = vunpack.c.l.b16 %v910
    %v1110 = vunpack.c.l.b16 %v911
    %v1111 = vunpack.c.l.b16 %v912
    %v1112 = vunpack.c.l.b16 %v913
    %v1113 = vunpack.c.l.b16 %v914
    %v1114 = vunpack.c.l.b16 %v915
    %v1115 = vunpack.c.l.b16 %v916
    %v1116 = vunpack.c.l.b16 %v917
    %v1117 = vunpack.c.l.b16 %v918
    %v1118 = vunpack.c.l.b16 %v919
    %v1119 = vunpack.c.l.b16 %v920
    %v1120 = vunpack.c.l.b16 %v921
    %v1121 = vunpack.c.l.b16 %v922
    %v1122 = vunpack.c.l.b16 %v923
    %v1123 = vunpack.c.l.b16 %v924
    %v1124 = vunpack.c.l.b16 %v925
    %v1125 = vunpack.c.l.b16 %v926
    %v1126 = vunpack.c.l.b16 %v927
    %v1127 = vunpack.c.l.b16 %v928
    %v1128 = vunpack.c.l.b16 %v929
    %v1129 = vunpack.c.l.b16 %v930
    %v1130 = vunpack.c.l.b16 %v931
    %v1131 = vunpack.c.l.b16 %v932
    %v1132 = vunpack.c.l.b16 %v933
    %v1133 = vunpack.c.l.b16 %v934
    %v1134 = vunpack.c.l.b16 %v935
    %v1135 = vunpack.c.l.b16 %v936
    %v1136 = vunpack.c.l.b16 %v937
    %v1137 = vunpack.c.l.b16 %v938
    %v1138 = vunpack.c.l.b16 %v939
    %v1139 = vunpack.c.l.b16 %v940
    %v1140 = vunpack.c.l.b16 %v941
    %v1141 = vunpack.c.l.b16 %v942
    %v1142 = vunpack.c.l.b16 %v943
    %v1143 = vunpack.c.l.b16 %v944
    %v1144 = vunpack.c.l.b16 %v945
    %v1145 = vunpack.c.l.b16 %v946
    %v1146 = vunpack.c.l.b16 %v947
    %v1147 = vunpack.c.l.b16 %v948
    %v1148 = vunpack.c.l.b16 %v949
    %v1149 = vunpack.c.l.b16 %v950
    %v1150 = vunpack.c.l.b16 %v951
    %v1151 = vunpack.c.l.b16 %v952
    %v1152 = vunpack.c.l.b16 %v953
    %v1153 = vunpack.c.l.b16 %v954
    %v1154 = vunpack.c.l.b16 %v955
    %v1155 = vunpack.c.l.b16 %v956
    %v1156 = vunpack.c.l.b16 %v957
    %v1157 = vunpack.c.l.b16 %v958
    %v1158 = vunpack.c.l.b16 %v959
    %v1159 = vunpack.c.l.b16 %v960
    %v1160 = vunpack.c.l.b16 %v961
    %v1161 = vunpack.c.l.b16 %v962
    %v1162 = vunpack.c.l.b16 %v963
    %v1163 = vunpack.c.l.b16 %v964
    %v1164 = vunpack.c.l.b16 %v965
    %v1165 = vunpack.c.l.b16 %v966
    %v1166 = vunpack.c.l.b16 %v967
    %v1167 = vunpack.c.l.b16 %v968
    %v1168 = vunpack.c.l.b16 %v969
    %v1169 = vunpack.c.l.b16 %v970
    %v1170 = vunpack.c.l.b16 %v971
    %v1171 = vunpack.c.l.b16 %v972
    %v1172 = vunpack.c.l.b16 %v973
    %v1173 = vunpack.c.l.b16 %v974
    %v1174 = vunpack.c.l.b16 %v975
    %v1175 = vunpack.c.l.b16 %v976
    %v1176 = vunpack.c.l.b16 %v977
    %v1177 = vunpack.c.l.b16 %v978
    %v1178 = vunpack.c.l.b16 %v979
    %v1179 = vunpack.c.l.b16 %v980
    %v1180 = vunpack.c.l.b16 %v981
    %v1181 = vunpack.c.l.b16 %v982
    %v1182 = vunpack.c.l.b16 %v983
    %v1183 = vunpack.c.l.b16 %v984
    %v1184 = vunpack.c.l.b16 %v985
    %v1185 = vunpack.c.l.b16 %v986
    %v1186 = vunpack.c.l.b16 %v987
    %v1187 = vunpack.c.l.b16 %v988
    %v1188 = vunpack.c.l.b16 %v989
    %v1189 = vunpack.c.l.b16 %v990
    %v1190 = vunpack.c.l.b16 %v991
    %v1191 = vunpack.c.l.b16 %v992
    %v1192 = vunpack.c.l.b16 %v993
    %v1193 = vunpack.c.l.b16 %v994
    %v1194 = vunpack.c.l.b16 %v995
    %v1195 = vpack.c.b16 %v1100, %v1099
    %v1196 = vpack.c.b16 %v1102, %v1101
    %v1197 = vpack.c.b16 %v1104, %v1103
    %v1198 = vpack.c.b16 %v1106, %v1105
    %v1199 = vpack.c.b16 %v1108, %v1107
    %v1200 = vpack.c.b16 %v1110, %v1109
    %v1201 = vpack.c.b16 %v1112, %v1111
    %v1202 = vpack.c.b16 %v1114, %v1113
    %v1203 = vpack.c.b16 %v1116, %v1115
    %v1204 = vpack.c.b16 %v1118, %v1117
    %v1205 = vpack.c.b16 %v1120, %v1119
    %v1206 = vpack.c.b16 %v1122, %v1121
    %v1207 = vpack.c.b16 %v1124, %v1123
    %v1208 = vpack.c.b16 %v1126, %v1125
    %v1209 = vpack.c.b16 %v1128, %v1127
    %v1210 = vpack.c.b16 %v1130, %v1129
    %v1211 = vpack.c.b16 %v1132, %v1131
    %v1212 = vpack.c.b16 %v1134, %v1133
    %v1213 = vpack.c.b16 %v1136, %v1135
    %v1214 = vpack.c.b16 %v1138, %v1137
    %v1215 = vpack.c.b16 %v1140, %v1139
    %v1216 = vpack.c.b16 %v1142, %v1141
    %v1217 = vpack.c.b16 %v1144, %v1143
    %v1218 = vpack.c.b16 %v1146, %v1145
    %v1219 = vpack.c.b16 %v1148, %v1147
    %v1220 = vpack.c.b16 %v1150, %v1149
    %v1221 = vpack.c.b16 %v1152, %v1151
    %v1222 = vpack.c.b16 %v1154, %v1153
    %v1223 = vpack.c.b16 %v1156, %v1155
    %v1224 = vpack.c.b16 %v1158, %v1157
    %v1225 = vpack.c.b16 %v1160, %v1159
    %v1226 = vpack.c.b16 %v1162, %v1161
    %v1227 = vpack.c.b16 %v1164, %v1163
    %v1228 = vpack.c.b16 %v1166, %v1165
    %v1229 = vpack.c.b16 %v1168, %v1167
    %v1230 = vpack.c.b16 %v1170, %v1169
    %v1231 = vpack.c.b16 %v1172, %v1171
    %v1232 = vpack.c.b16 %v1174, %v1173
    %v1233 = vpack.c.b16 %v1176, %v1175
    %v1234 = vpack.c.b16 %v1178, %v1177
    %v1235 = vpack.c.b16 %v1180, %v1179
    %v1236 = vpack.c.b16 %v1182, %v1181
    %v1237 = vpack.c.b16 %v1184, %v1183
    %v1238 = vpack.c.b16 %v1186, %v1185
    %v1239 = vpack.c.b16 %v1188, %v1187
    %v1240 = vpack.c.b16 %v1190, %v1189
    %v1241 = vpack.c.b16 %v1192, %v1191
    %v1242 = vpack.c.b16 %v1194, %v1193
    %1291 = vmatprep.subr.bf16.mxu0 0
    %1292 = vmatpush1.bf16.msra.mxu0 %v1195
    %1293 = vmatprep.subr.bf16.mxu0 0
    %1294 = vmatpush1.bf16.msra.mxu0 %v1196
    %1295 = vmatprep.subr.bf16.mxu0 0
    %1296 = vmatpush1.bf16.msra.mxu0 %v1197
    %1297 = vmatprep.subr.bf16.mxu0 0
    %1298 = vmatpush1.bf16.msra.mxu0 %v1198
    %1299 = vmatprep.subr.bf16.mxu0 0
    %1300 = vmatpush1.bf16.msra.mxu0 %v1199
    %1301 = vmatprep.subr.bf16.mxu0 0
    %1302 = vmatpush1.bf16.msra.mxu0 %v1200
    %1303 = vmatprep.subr.bf16.mxu0 0
    %1304 = vmatpush1.bf16.msra.mxu0 %v1201
    %1305 = vmatprep.subr.bf16.mxu0 0
    %1306 = vmatpush1.bf16.msra.mxu0 %v1202
    %1307 = vmatprep.subr.bf16.mxu0 0
    %1308 = vmatpush1.bf16.msra.mxu0 %v1203
    %1309 = vmatprep.subr.bf16.mxu0 0
    %1310 = vmatpush1.bf16.msra.mxu0 %v1204
    %1311 = vmatprep.subr.bf16.mxu0 0
    %1312 = vmatpush1.bf16.msra.mxu0 %v1205
    %1313 = vmatprep.subr.bf16.mxu0 0
    %1314 = vmatpush1.bf16.msra.mxu0 %v1206
    %1315 = vmatprep.subr.bf16.mxu0 0
    %1316 = vmatpush1.bf16.msra.mxu0 %v1207
    %1317 = vmatprep.subr.bf16.mxu0 0
    %1318 = vmatpush1.bf16.msra.mxu0 %v1208
    %1319 = vmatprep.subr.bf16.mxu0 0
    %1320 = vmatpush1.bf16.msra.mxu0 %v1209
    %1321 = vmatprep.subr.bf16.mxu0 0
    %1322 = vmatpush1.bf16.msra.mxu0 %v1210
    %1323 = vmatprep.mubr.bf16.mxu0 %v895
    %1324 = vmatmul.mubr.bf16.gmra.mrb[0].mxu0 %v894
    %v1325 = vpop.f32.mrb[0].mxu0
    %v1326 = vadd.f32 %v1001, %v1325
    %v1327 = vpop.f32.mrb[0].mxu0
    %v1328 = vpop.f32.mrb[0].mxu0
    %v1329 = vpop.f32.mrb[0].mxu0
    %1330 = vdwg.mxu0
    %1331 = vmatprep.subr.bf16.mxu0 0
    %1332 = vmatpush1.bf16.msra.mxu0 %v1211
    %1333 = vmatprep.subr.bf16.mxu0 0
    %1334 = vmatpush1.bf16.msra.mxu0 %v1212
    %1335 = vmatprep.subr.bf16.mxu0 0
    %1336 = vmatpush1.bf16.msra.mxu0 %v1213
    %1337 = vmatprep.subr.bf16.mxu0 0
    %1338 = vmatpush1.bf16.msra.mxu0 %v1214
    %1339 = vmatprep.subr.bf16.mxu0 0
    %1340 = vmatpush1.bf16.msra.mxu0 %v1215
    %1341 = vmatprep.subr.bf16.mxu0 0
    %1342 = vmatpush1.bf16.msra.mxu0 %v1216
    %1343 = vmatprep.subr.bf16.mxu0 0
    %1344 = vmatpush1.bf16.msra.mxu0 %v1217
    %1345 = vmatprep.subr.bf16.mxu0 0
    %1346 = vmatpush1.bf16.msra.mxu0 %v1218
    %1347 = vmatprep.subr.bf16.mxu0 0
    %1348 = vmatpush1.bf16.msra.mxu0 %v1219
    %1349 = vmatprep.subr.bf16.mxu0 0
    %1350 = vmatpush1.bf16.msra.mxu0 %v1220
    %1351 = vmatprep.subr.bf16.mxu0 0
    %1352 = vmatpush1.bf16.msra.mxu0 %v1221
    %1353 = vmatprep.subr.bf16.mxu0 0
    %1354 = vmatpush1.bf16.msra.mxu0 %v1222
    %1355 = vmatprep.subr.bf16.mxu0 0
    %1356 = vmatpush1.bf16.msra.mxu0 %v1223
    %1357 = vmatprep.subr.bf16.mxu0 0
    %1358 = vmatpush1.bf16.msra.mxu0 %v1224
    %1359 = vmatprep.subr.bf16.mxu0 0
    %1360 = vmatpush1.bf16.msra.mxu0 %v1225
    %1361 = vmatprep.subr.bf16.mxu0 0
    %1362 = vmatpush1.bf16.msra.mxu0 %v1226
    %1363 = vmatprep.mubr.bf16.mxu0 %v897
    %1364 = vmatmul.mubr.bf16.gmra.mrb[0].mxu0 %v896
    %v1365 = vpop.f32.mrb[0].mxu0
    %v1366 = vadd.f32 %v1326, %v1365
    %v1367 = vpop.f32.mrb[0].mxu0
    %v1368 = vpop.f32.mrb[0].mxu0
    %v1369 = vpop.f32.mrb[0].mxu0
    %1370 = vdwg.mxu0
    %1371 = vmatprep.subr.bf16.mxu0 0
    %1372 = vmatpush1.bf16.msra.mxu0 %v1227
    %1373 = vmatprep.subr.bf16.mxu0 0
    %1374 = vmatpush1.bf16.msra.mxu0 %v1228
    %1375 = vmatprep.subr.bf16.mxu0 0
    %1376 = vmatpush1.bf16.msra.mxu0 %v1229
    %1377 = vmatprep.subr.bf16.mxu0 0
    %1378 = vmatpush1.bf16.msra.mxu0 %v1230
    %1379 = vmatprep.subr.bf16.mxu0 0
    %1380 = vmatpush1.bf16.msra.mxu0 %v1231
    %1381 = vmatprep.subr.bf16.mxu0 0
    %1382 = vmatpush1.bf16.msra.mxu0 %v1232
    %1383 = vmatprep.subr.bf16.mxu0 0
    %1384 = vmatpush1.bf16.msra.mxu0 %v1233
    %1385 = vmatprep.subr.bf16.mxu0 0
    %1386 = vmatpush1.bf16.msra.mxu0 %v1234
    %1387 = vmatprep.subr.bf16.mxu0 0
    %1388 = vmatpush1.bf16.msra.mxu0 %v1235
    %1389 = vmatprep.subr.bf16.mxu0 0
    %1390 = vmatpush1.bf16.msra.mxu0 %v1236
    %1391 = vmatprep.subr.bf16.mxu0 0
    %1392 = vmatpush1.bf16.msra.mxu0 %v1237
    %1393 = vmatprep.subr.bf16.mxu0 0
    %1394 = vmatpush1.bf16.msra.mxu0 %v1238
    %1395 = vmatprep.subr.bf16.mxu0 0
    %1396 = vmatpush1.bf16.msra.mxu0 %v1239
    %1397 = vmatprep.subr.bf16.mxu0 0
    %1398 = vmatpush1.bf16.msra.mxu0 %v1240
    %1399 = vmatprep.subr.bf16.mxu0 0
    %1400 = vmatpush1.bf16.msra.mxu0 %v1241
    %1401 = vmatprep.subr.bf16.mxu0 0
    %1402 = vmatpush1.bf16.msra.mxu0 %v1242
    %1403 = vmatprep.mubr.bf16.mxu0 %v899
    %1404 = vmatmul.mubr.bf16.gmra.mrb[0].mxu0 %v898
    %v1405 = vpop.f32.mrb[0].mxu0
    %v1406 = vadd.f32 %v1366, %v1405
    %v1407 = vpop.f32.mrb[0].mxu0
    %v1408 = vpop.f32.mrb[0].mxu0
    %v1409 = vpop.f32.mrb[0].mxu0
    %1410 = vdwg.mxu0
    %v1411 = vmax.f32 %v1406, 0.0
    %vm1412 = vcmask 123904
    %1413 = vst.msk [vmem:[#allocation2] sm:$0x3] %vm1412, %v1411
    // Predicated region
    $region18: #{tpu_custom_call.1} parent=1 // pred_check
      _
    $region19: #{tpu_custom_call.1} parent=1 // pred_check_branch
      %1415 = sbr.rel (0) target = $region21
    $region20: #{tpu_custom_call.1} parent=1 // pred_region
      %s1417 = ssub.s32 32, 32
      %1418 = vsyncadd [#allocation3], %s1417
      %s1420 = sshll.u32 [#allocation2], 4
      %s1421 = int_to_ptr.vmem [resolvable:$true] %s1420
      %1423 = dma.vmem_to_hbm [thread:$0]  %s1421, 32, %s4, [#allocation3]
    $region21: #{tpu_custom_call.1} parent=1 // pred_fallthru
      _
    // Predicated region
    $region22: #{tpu_custom_call.1} parent=1 // pred_check
      _
    $region23: #{tpu_custom_call.1} parent=1 // pred_check_branch
      %1425 = sbr.rel (0) target = $region25
    $region24: #{tpu_custom_call.1} parent=1 // pred_region
      %1426 = dma.done [#allocation3], 32
    $region25: #{tpu_custom_call.1} parent=1 // pred_fallthru
      _
    %1427 = vsyncpa [#allocation3], 1

</llo_original>
